<compile_context>
chip_gen: v7x
topology: tpu7x:2x2x1
jax: 0.10.0
libtpu: 0.0.40
codegen_flags: <defaults>
</compile_context>

<pallas_src>
import functools

import jax
import jax.numpy as jnp
import numpy as np
from jax import lax
from jax.experimental import pallas as pl
from jax.experimental.pallas import tpu as pltpu


def _round_up(a, b):
    return ((a + b - 1) // b) * b


def _sq_dist_tile(xr, xc, mag_r, mag_c):
    """relu(|xr|^2 + |xc|^2 - 2 xr.xc^T) without materializing xc^T."""
    sim = lax.dot_general(xr, xc, (((1,), (1,)), ((), ())),
                          preferred_element_type=jnp.float32)        # (TM, TN)
    return jnp.maximum(mag_r + mag_c - 2.0 * sim, 0.0)


def _fold8_tree(a):
    """Pairwise-tree reduce the sublane axis of (TM, TN) down to (8, TN)."""
    chunks = [a[k * 8:(k + 1) * 8, :] for k in range(a.shape[0] // 8)]
    while len(chunks) > 1:
        nxt = [chunks[k] + chunks[k + 1] for k in range(0, len(chunks) - 1, 2)]
        if len(chunks) % 2:
            nxt.append(chunks[-1])
        chunks = nxt
    return chunks[0]


def _neg_comp_kernel(xr_ref, xc_ref, mr_ref, mc_ref, tr_ref, tc_ref, out_ref,
                     *, margin, hard_mining, n_real):
    """Per-row negative component, accumulated across column tiles.

    hard_mining=False: sum_j exp(margin - dist_ij) over valid negatives j.
    hard_mining=True : exp(margin - min_j dist_ij); min is tracked on the
                       squared distance, sqrt+exp applied once at finalize.
    """
    j = pl.program_id(1)
    tn = xc_ref.shape[0]

    @pl.when(j == 0)
    def _init():
        if hard_mining:
            out_ref[...] = jnp.full(out_ref.shape, jnp.inf, dtype=out_ref.dtype)
        else:
            out_ref[...] = jnp.zeros(out_ref.shape, dtype=out_ref.dtype)

    z = _sq_dist_tile(xr_ref[...], xc_ref[...], mr_ref[...], mc_ref[...])

    col_idx = j * tn + lax.broadcasted_iota(jnp.int32, (1, tn), 1)
    # valid negatives: different class, strictly positive distance (mirrors
    # torch's neg_dist.nonzero() gather), and not a padding column.
    neg_valid = (tr_ref[...] != tc_ref[...]) & (z > 0.0) & (col_idx < n_real)

    if hard_mining:
        tile_min = jnp.min(jnp.where(neg_valid, z, jnp.inf),
                           axis=1, keepdims=True)                    # (TM, 1)
        out_ref[...] = jnp.minimum(out_ref[...], tile_min)

        @pl.when(j == pl.num_programs(1) - 1)
        def _finalize():
            out_ref[...] = jnp.exp(margin - jnp.sqrt(out_ref[...]))
    else:
        dist = jnp.sqrt(z)
        out_ref[...] += jnp.sum(
            jnp.where(neg_valid, jnp.exp(margin - dist), 0.0),
            axis=1, keepdims=True)                                   # (TM, 1)


def _pair_loss_kernel(xr_ref, xc_ref, mr_ref, mc_ref, tr_ref, tc_ref,
                      ncr_ref, ncc_ref, loss_ref, *, n_real):
    """Accumulate relu(log(nc_i + nc_j) + dist_ij)^2 over positive pairs i<j
    into lane-dense (8, TN) per-row-tile partial sums."""
    i = pl.program_id(0)
    j = pl.program_id(1)
    tm = xr_ref.shape[0]
    tn = xc_ref.shape[0]

    @pl.when(j == 0)
    def _init():
        loss_ref[...] = jnp.zeros(loss_ref.shape, dtype=loss_ref.dtype)

    # pair_mask requires row < col and tm == tn, so tiles strictly below the
    # diagonal are identically zero: skip their matmul / sqrt / log entirely.
    @pl.when(j >= i)
    def _compute():
        z = _sq_dist_tile(xr_ref[...], xc_ref[...], mr_ref[...], mc_ref[...])
        dist = jnp.sqrt(z)

        row_idx = i * tm + lax.broadcasted_iota(jnp.int32, (tm, 1), 0)
        col_idx = j * tn + lax.broadcasted_iota(jnp.int32, (1, tn), 1)
        pair_mask = ((tr_ref[...] == tc_ref[...])
                     & (row_idx < col_idx)
                     & (row_idx < n_real) & (col_idx < n_real))

        j_heat = jnp.log(ncr_ref[...] + ncc_ref[...]) + dist
        contrib = jnp.where(pair_mask, jnp.maximum(j_heat, 0.0) ** 2, 0.0)

        loss_ref[...] += _fold8_tree(contrib)


def _choose_tiling(n, tile):
    """Pick (npad, tm) with tm | npad, tm % 8 == 0 and (tm % 128 == 0 or
    tm == npad).  Bias toward small padding, and toward >= 2 row tiles when
    the tile stays >= 256 (keeps both v7x TensorCores busy)."""
    if n <= 256:
        npad = _round_up(max(n, 8), 8)
        return npad, npad
    npad = _round_up(n, 128)
    divs = [t for t in range(128, npad + 1, 128) if npad % t == 0]
    cands = [t for t in divs if t <= tile] or [min(divs)]
    multi = [t for t in cands if npad // t >= 2 and t >= 256]
    return npad, (max(multi) if multi else max(cands))


def lifted_structure_loss(inputs, targets, margin=1.0, hard_mining=False,
                          tile=512):
    """inputs: (N, D) float, targets: (N,) int -> scalar float32 loss."""
    n, d = inputs.shape
    dp = _round_up(max(d, 1), 128)

    # VMEM-gate the tile: two double-buffered (tile, dp) f32 x blocks cost
    # ~16*tile*dp bytes; keep them under ~24 MiB so v7x's 64 MiB VMEM still
    # fits with headroom (trivially fits v5e/v6e's 128 MiB).
    tile_cap = max(128, ((24 << 20) // (16 * dp)) // 128 * 128)
    npad, tm = _choose_tiling(n, min(tile, tile_cap))
    tn = tm
    r, c = npad // tm, npad // tn

    xp = jnp.zeros((npad, dp), jnp.float32).at[:n, :d].set(
        inputs.astype(jnp.float32))
    tpad = jnp.full((npad,), -1, jnp.int32).at[:n].set(
        targets.astype(jnp.int32))
    mag = jnp.sum(xp * xp, axis=1)

    t_col, t_row = tpad.reshape(npad, 1), tpad.reshape(1, npad)
    mag_col, mag_row = mag.reshape(npad, 1), mag.reshape(1, npad)

    row_xspec = pl.BlockSpec((tm, dp), lambda i, j: (i, 0))
    col_xspec = pl.BlockSpec((tn, dp), lambda i, j: (j, 0))
    row_vspec = pl.BlockSpec((tm, 1), lambda i, j: (i, 0))
    col_vspec = pl.BlockSpec((1, tn), lambda i, j: (0, j))
    cparams = pltpu.CompilerParams(
        dimension_semantics=("parallel", "arbitrary"),
        vmem_limit_bytes=48 * 1024 * 1024)

    # Pass 1: per-row negative component (accumulated over column tiles).
    nc_col = pl.pallas_call(
        functools.partial(_neg_comp_kernel, margin=float(margin),
                          hard_mining=bool(hard_mining), n_real=n),
        out_shape=jax.ShapeDtypeStruct((npad, 1), jnp.float32),
        grid=(r, c),
        in_specs=[row_xspec, col_xspec, row_vspec, col_vspec,
                  row_vspec, col_vspec],
        out_specs=pl.BlockSpec((tm, 1), lambda i, j: (i, 0)),
        compiler_params=cparams,
    )(xp, xp, mag_col, mag_row, t_col, t_row)
    nc_row = nc_col.reshape(1, npad)

    # Pass 2: positive-pair (i<j) contributions, lane-dense partial sums.
    loss_p = pl.pallas_call(
        functools.partial(_pair_loss_kernel, n_real=n),
        out_shape=jax.ShapeDtypeStruct((r * 8, tn), jnp.float32),
        grid=(r, c),
        in_specs=[row_xspec, col_xspec, row_vspec, col_vspec,
                  row_vspec, col_vspec, row_vspec, col_vspec],
        out_specs=pl.BlockSpec((8, tn), lambda i, j: (i, 0)),
        compiler_params=cparams,
    )(xp, xp, mag_col, mag_row, t_col, t_row, nc_col, nc_row)

    # len_p (= pos_mask.nonzero().shape[0] in the torch code) is a pure label
    # statistic: same-class ordered pairs excluding the diagonal.  No kernel.
    t32 = targets.astype(jnp.int32)
    len_p = (jnp.sum((t32[:, None] == t32[None, :]).astype(jnp.float32))
             - jnp.float32(n))

    # TODO(synk): len_p == 0 (no positive pairs) returns NaN, and rows with no
    # valid negatives give log(0) = -inf which relu clamps to a 0 contribution,
    # instead of raising like the torch loop would.
    return jnp.sum(loss_p) / len_p


def _numpy_reference(x, t, margin=1.0, hard_mining=False):
    x = np.asarray(x, np.float64)
    t = np.asarray(t)
    n = x.shape[0]
    mag = (x ** 2).sum(1)
    dist = np.sqrt(np.maximum(mag[:, None] + mag[None, :] - 2.0 * (x @ x.T),
                              0.0))
    pos_full = t[:, None] == t[None, :]
    eye = np.eye(n, dtype=bool)
    pos_mask = pos_full & ~eye
    neg_valid = (~pos_full) & (dist != 0.0)
    if hard_mining:
        nc = np.exp(margin - np.where(neg_valid, dist, np.inf).min(axis=1))
    else:
        nc = np.where(neg_valid, np.exp(margin - dist), 0.0).sum(axis=1)
    jheat = np.log(nc[:, None] + nc[None, :]) + dist
    upper = np.arange(n)[:, None] < np.arange(n)[None, :]
    contrib = np.where(pos_mask & upper, np.maximum(jheat, 0.0) ** 2, 0.0)
    return contrib.sum() / pos_mask.sum()


if __name__ == "__main__":
    key = jax.random.PRNGKey(0)
    k1, k2, k3 = jax.random.split(key, 3)

    # Small case (single small tile): n=8, d=32, 4 classes of 2.
    x_small = jax.random.normal(k1, (8, 32), dtype=jnp.float32)
    t_small = jnp.array([0, 0, 1, 1, 2, 2, 3, 3], dtype=jnp.int32)

    # Mid-sized case: n=300 pads to a single 384 tile (not 512), 10 classes.
    x_mid = jax.random.normal(k2, (300, 40), dtype=jnp.float32)
    t_mid = jnp.arange(300, dtype=jnp.int32) % 10

    # Larger case exercising the multi-tile grid + lower-triangle tile skip.
    x_big = jax.random.normal(k3, (600, 40), dtype=jnp.float32)
    t_big = jnp.arange(600, dtype=jnp.int32) % 10

    for (x, t, tol) in ((x_small, t_small, 1e-4),
                        (x_mid, t_mid, 2e-3),
                        (x_big, t_big, 2e-3)):
        for hard in (False, True):
            loss = lifted_structure_loss(x, t, margin=1.0, hard_mining=hard)
            jax.block_until_ready(loss)
            ref = _numpy_reference(np.asarray(x), np.asarray(t),
                                   margin=1.0, hard_mining=hard)
            np.testing.assert_allclose(np.asarray(loss), ref,
                                       rtol=tol, atol=tol)

    print("KERNEL_OK")
</pallas_src>

<mosaic_0001>
module attributes {stable_mosaic.version = 11 : i64} {
  func.func @_neg_comp_kernel(%arg0: i32, %arg1: i32, %arg2: memref<8x128xf32, #tpu.memory_space<vmem>>, %arg3: memref<8x128xf32, #tpu.memory_space<vmem>>, %arg4: memref<8x1xf32, #tpu.memory_space<vmem>>, %arg5: memref<1x8xf32, #tpu.memory_space<vmem>>, %arg6: memref<8x1xi32, #tpu.memory_space<vmem>>, %arg7: memref<1x8xi32, #tpu.memory_space<vmem>>, %arg8: memref<8x1xf32, #tpu.memory_space<vmem>>) attributes {dimension_semantics = [#tpu.dimension_semantics<parallel>, #tpu.dimension_semantics<arbitrary>], iteration_bounds = array<i64: 1, 1>, scalar_prefetch = 0 : i64, scratch_operands = 0 : i64, tpu.core_type = #tpu.core_type<tc>, window_params = [{transform_indices = @transform_0, window_bounds = array<i64: 8, 128>}, {transform_indices = @transform_1, window_bounds = array<i64: 8, 128>}, {transform_indices = @transform_2, window_bounds = array<i64: 8, 1>}, {transform_indices = @transform_3, window_bounds = array<i64: 1, 8>}, {transform_indices = @transform_4, window_bounds = array<i64: 8, 1>}, {transform_indices = @transform_5, window_bounds = array<i64: 1, 8>}, {transform_indices = @transform_6, window_bounds = array<i64: 8, 1>}]} {
    %c0_i32 = arith.constant 0 : i32
    %0 = arith.cmpi eq, %arg1, %c0_i32 : i32
    %1 = arith.extui %0 : i1 to i32
    %c0_i32_0 = arith.constant 0 : i32
    %2 = arith.cmpi ne, %1, %c0_i32_0 : i32
    scf.if %2 {
      %cst_23 = arith.constant 0.000000e+00 : f32
      %43 = vector.broadcast %cst_23 : f32 to vector<8x1xf32>
      %c0_24 = arith.constant 0 : index
      %c0_25 = arith.constant 0 : index
      %44 = vector.load %arg8[%c0_24, %c0_25] : memref<8x1xf32, #tpu.memory_space<vmem>>, vector<8x1xf32>
      tpu.vector_store %arg8[%c0_24, %c0_25], %43 {strides = array<i32>} : memref<8x1xf32, #tpu.memory_space<vmem>>, vector<8x1xf32>,
    } else {
    }
    %c0 = arith.constant 0 : index
    %c0_1 = arith.constant 0 : index
    %3 = vector.load %arg2[%c0, %c0_1] : memref<8x128xf32, #tpu.memory_space<vmem>>, vector<8x128xf32>
    %c0_2 = arith.constant 0 : index
    %c0_3 = arith.constant 0 : index
    %4 = vector.load %arg3[%c0_2, %c0_3] : memref<8x128xf32, #tpu.memory_space<vmem>>, vector<8x128xf32>
    %c0_4 = arith.constant 0 : index
    %c0_5 = arith.constant 0 : index
    %5 = vector.load %arg4[%c0_4, %c0_5] : memref<8x1xf32, #tpu.memory_space<vmem>>, vector<8x1xf32>
    %c0_6 = arith.constant 0 : index
    %c0_7 = arith.constant 0 : index
    %6 = vector.load %arg5[%c0_6, %c0_7] : memref<1x8xf32, #tpu.memory_space<vmem>>, vector<1x8xf32>
    %cst = arith.constant dense<0.000000e+00> : vector<8x8xf32>
    %7 = tpu.matmul %3, %4, %cst {dimension_numbers = #tpu.dot_dimension_numbers<[1], [1], [0], [0], [0, 0, 1, 0], [], []>} : vector<8x128xf32>, vector<8x128xf32>, vector<8x8xf32> -> vector<8x8xf32>
    %8 = vector.broadcast %5 : vector<8x1xf32> to vector<8x8xf32>
    %9 = vector.broadcast %6 : vector<1x8xf32> to vector<8x8xf32>
    %10 = arith.addf %8, %9 : vector<8x8xf32>
    %cst_8 = arith.constant 2.000000e+00 : f32
    %11 = vector.broadcast %cst_8 : f32 to vector<8x8xf32>
    %12 = arith.mulf %11, %7 : vector<8x8xf32>
    %13 = arith.subf %10, %12 : vector<8x8xf32>
    %cst_9 = arith.constant 0.000000e+00 : f32
    %14 = vector.broadcast %cst_9 : f32 to vector<8x8xf32>
    %15 = arith.maximumf %13, %14 : vector<8x8xf32>
    %c8_i32 = arith.constant 8 : i32
    %16 = arith.muli %arg1, %c8_i32 : i32
    %17 = tpu.iota {dimensions = array<i32: 1>} : vector<1x8xi32>
    %18 = vector.broadcast %16 : i32 to vector<1x8xi32>
    %19 = arith.addi %18, %17 : vector<1x8xi32>
    %c0_10 = arith.constant 0 : index
    %c0_11 = arith.constant 0 : index
    %20 = vector.load %arg6[%c0_10, %c0_11] : memref<8x1xi32, #tpu.memory_space<vmem>>, vector<8x1xi32>
    %c0_12 = arith.constant 0 : index
    %c0_13 = arith.constant 0 : index
    %21 = vector.load %arg7[%c0_12, %c0_13] : memref<1x8xi32, #tpu.memory_space<vmem>>, vector<1x8xi32>
    %22 = vector.broadcast %20 : vector<8x1xi32> to vector<8x8xi32>
    %23 = vector.broadcast %21 : vector<1x8xi32> to vector<8x8xi32>
    %24 = arith.cmpi ne, %22, %23 : vector<8x8xi32>
    %cst_14 = arith.constant 0.000000e+00 : f32
    %25 = vector.broadcast %cst_14 : f32 to vector<8x8xf32>
    %26 = arith.cmpf ogt, %15, %25 : vector<8x8xf32>
    %27 = arith.andi %24, %26 : vector<8x8xi1>
    %c8_i32_15 = arith.constant 8 : i32
    %28 = vector.broadcast %c8_i32_15 : i32 to vector<1x8xi32>
    %29 = arith.cmpi slt, %19, %28 : vector<1x8xi32>
    %30 = vector.broadcast %29 : vector<1x8xi1> to vector<8x8xi1>
    %31 = arith.andi %27, %30 : vector<8x8xi1>
    %32 = math.sqrt %15 : vector<8x8xf32>
    %c0_16 = arith.constant 0 : index
    %c0_17 = arith.constant 0 : index
    %33 = vector.load %arg8[%c0_16, %c0_17] : memref<8x1xf32, #tpu.memory_space<vmem>>, vector<8x1xf32>
    %cst_18 = arith.constant 1.000000e+00 : f32
    %34 = vector.broadcast %cst_18 : f32 to vector<8x8xf32>
    %35 = arith.subf %34, %32 : vector<8x8xf32>
    %36 = math.exp %35 : vector<8x8xf32>
    %cst_19 = arith.constant 0.000000e+00 : f32
    %37 = vector.broadcast %cst_19 : f32 to vector<8x8xf32>
    %38 = arith.select %31, %36, %37 : vector<8x8xi1>, vector<8x8xf32>
    %cst_20 = arith.constant dense<0.000000e+00> : vector<8xf32>
    %39 = vector.multi_reduction <add>, %38, %cst_20 [1] : vector<8x8xf32> to vector<8xf32>
    %40 = vector.shape_cast %39 : vector<8xf32> to vector<8x1xf32>
    %41 = arith.addf %33, %40 : vector<8x1xf32>
    %c0_21 = arith.constant 0 : index
    %c0_22 = arith.constant 0 : index
    %42 = vector.load %arg8[%c0_21, %c0_22] : memref<8x1xf32, #tpu.memory_space<vmem>>, vector<8x1xf32>
    tpu.vector_store %arg8[%c0_21, %c0_22], %41 {strides = array<i32>} : memref<8x1xf32, #tpu.memory_space<vmem>>, vector<8x1xf32>,
    return
  }
  func.func @transform_0(%arg0: i32, %arg1: i32) -> (i32, i32) {
    %c0_i32 = arith.constant 0 : i32
    %c0_i32_0 = arith.constant 0 : i32
    return %arg0, %c0_i32 : i32, i32
  }
  func.func @transform_1(%arg0: i32, %arg1: i32) -> (i32, i32) {
    %c0_i32 = arith.constant 0 : i32
    %c0_i32_0 = arith.constant 0 : i32
    return %arg1, %c0_i32 : i32, i32
  }
  func.func @transform_2(%arg0: i32, %arg1: i32) -> (i32, i32) {
    %c0_i32 = arith.constant 0 : i32
    %c0_i32_0 = arith.constant 0 : i32
    return %arg0, %c0_i32 : i32, i32
  }
  func.func @transform_3(%arg0: i32, %arg1: i32) -> (i32, i32) {
    %c0_i32 = arith.constant 0 : i32
    %c0_i32_0 = arith.constant 0 : i32
    return %c0_i32, %arg1 : i32, i32
  }
  func.func @transform_4(%arg0: i32, %arg1: i32) -> (i32, i32) {
    %c0_i32 = arith.constant 0 : i32
    %c0_i32_0 = arith.constant 0 : i32
    return %arg0, %c0_i32 : i32, i32
  }
  func.func @transform_5(%arg0: i32, %arg1: i32) -> (i32, i32) {
    %c0_i32 = arith.constant 0 : i32
    %c0_i32_0 = arith.constant 0 : i32
    return %c0_i32, %arg1 : i32, i32
  }
  func.func @transform_6(%arg0: i32, %arg1: i32) -> (i32, i32) {
    %c0_i32 = arith.constant 0 : i32
    %c0_i32_0 = arith.constant 0 : i32
    return %arg0, %c0_i32 : i32, i32
  }
}

</mosaic_0001>

<llo_original>
// kernel: tpu_custom_call.1
$region0: #{tpu_custom_call.1}
  #allocation0 [shape = 'u32[]', space=smem, size = 0x4, offset = 0x4, fixed_abs, tag = 'smem constant byte address 0x4 - core index']
  #allocation1 [shape = 'u32[144,128]{1,0:T(1,128)}', space=vmem, size = 0x12000, scoped, tag = 'internal scratch']
  %s0 = inlined_call_operand.vmem [shape: f32[8,128], index: 0, kind: input, shape index: {}]
  %s1 = inlined_call_operand.vmem [shape: f32[8,128], index: 1, kind: input, shape index: {}]
  %s2 = inlined_call_operand.vmem [shape: f32[8,1], index: 2, kind: input, shape index: {}]
  %s3 = inlined_call_operand.vmem [shape: f32[1,8], index: 3, kind: input, shape index: {}]
  %s4 = inlined_call_operand.vmem [shape: s32[8,1], index: 4, kind: input, shape index: {}]
  %s5 = inlined_call_operand.vmem [shape: s32[1,8], index: 5, kind: input, shape index: {}]
  %s6 = inlined_call_operand.vmem [shape: f32[8,1], index: 6, kind: output, shape index: {}]
  %s7 = sld [smem:[#allocation0]]
  $region38: #{tpu_custom_call.1} parent=0
    _
  %s9 = ssub.s32 1, %s7
  %s10 = scalar_select 0, %s9, %s7
  // Predicated region
  $region2: #{tpu_custom_call.1} parent=0 // pred_check
    _
  $region3: #{tpu_custom_call.1} parent=0 // pred_check_branch
    %12 = sbr.rel (0) target = $region5
  $region4: #{tpu_custom_call.1} parent=0 // pred_region
    _
  $region5: #{tpu_custom_call.1} parent=0 // pred_fallthru
    _
  // Predicated region
  $region6: #{tpu_custom_call.1} parent=0 // pred_check
    _
  $region7: #{tpu_custom_call.1} parent=0 // pred_check_branch
    %14 = sbr.rel (0) target = $region9
  $region8: #{tpu_custom_call.1} parent=0 // pred_region
    _
  $region9: #{tpu_custom_call.1} parent=0 // pred_fallthru
    _
  // Predicated region
  $region10: #{tpu_custom_call.1} parent=0 // pred_check
    _
  $region11: #{tpu_custom_call.1} parent=0 // pred_check_branch
    %16 = sbr.rel (0) target = $region13
  $region12: #{tpu_custom_call.1} parent=0 // pred_region
    _
  $region13: #{tpu_custom_call.1} parent=0 // pred_fallthru
    _
  // Predicated region
  $region14: #{tpu_custom_call.1} parent=0 // pred_check
    _
  $region15: #{tpu_custom_call.1} parent=0 // pred_check_branch
    %18 = sbr.rel (0) target = $region17
  $region16: #{tpu_custom_call.1} parent=0 // pred_region
    _
  $region17: #{tpu_custom_call.1} parent=0 // pred_fallthru
    _
  // Predicated region
  $region18: #{tpu_custom_call.1} parent=0 // pred_check
    _
  $region19: #{tpu_custom_call.1} parent=0 // pred_check_branch
    %20 = sbr.rel (0) target = $region21
  $region20: #{tpu_custom_call.1} parent=0 // pred_region
    _
  $region21: #{tpu_custom_call.1} parent=0 // pred_fallthru
    _
  // Predicated region
  $region22: #{tpu_custom_call.1} parent=0 // pred_check
    _
  $region23: #{tpu_custom_call.1} parent=0 // pred_check_branch
    %22 = sbr.rel (0) target = $region25
  $region24: #{tpu_custom_call.1} parent=0 // pred_region
    _
  $region25: #{tpu_custom_call.1} parent=0 // pred_fallthru
    _
  %p23 = scmp.eq.s32.totalorder 0, 0
  // Predicated region
  $region26: #{tpu_custom_call.1} parent=0 // pred_check
    %p24 = pneg %p23
  $region27: #{tpu_custom_call.1} parent=0 // pred_check_branch
    %26 = sbr.rel (%p24) target = $region29
  $region28: #{tpu_custom_call.1} parent=0 // pred_region
    %vm27 = vcmask 7168
    %28 = vst.msk [vmem:[%s6] sm:$0xff] %vm27, 0.0
  $region29: #{tpu_custom_call.1} parent=0 // pred_fallthru
    _
  %v29 = vld [vmem:[%s0] sm:$0xff]
  %v30 = vld [vmem:[%s1] sm:$0xff]
  %v31 = vld [vmem:[%s2] sm:$0xff]
  %v32 = vld [vmem:[%s3] sm:$0x1]
  %33 = vmatprep.subr.mxu0 0.0
  %34 = vmatpush1.xpose.msra.mxu0 %v30
  %35 = vmatprep.subr.mxu0 0.0
  %36 = vmatpush1.xpose.msra.mxu0 0.0
  %37 = vmatprep.subr.mxu0 0.0
  %38 = vmatpush1.xpose.msra.mxu0 0.0
  %39 = vmatprep.subr.mxu0 0.0
  %40 = vmatpush1.xpose.msra.mxu0 0.0
  %41 = vmatprep.subr.mxu0 0.0
  %42 = vmatpush1.xpose.msra.mxu0 0.0
  %43 = vmatprep.subr.mxu0 0.0
  %44 = vmatpush1.xpose.msra.mxu0 0.0
  %45 = vmatprep.subr.mxu0 0.0
  %46 = vmatpush1.xpose.msra.mxu0 0.0
  %47 = vmatprep.subr.mxu0 0.0
  %48 = vmatpush1.xpose.msra.mxu0 0.0
  %49 = vmatprep.subr.mxu0 0.0
  %50 = vmatpush1.xpose.msra.mxu0 0.0
  %51 = vmatprep.subr.mxu0 0.0
  %52 = vmatpush1.xpose.msra.mxu0 0.0
  %53 = vmatprep.subr.mxu0 0.0
  %54 = vmatpush1.xpose.msra.mxu0 0.0
  %55 = vmatprep.subr.mxu0 0.0
  %56 = vmatpush1.xpose.msra.mxu0 0.0
  %57 = vmatprep.subr.mxu0 0.0
  %58 = vmatpush1.xpose.msra.mxu0 0.0
  %59 = vmatprep.subr.mxu0 0.0
  %60 = vmatpush1.xpose.msra.mxu0 0.0
  %61 = vmatprep.subr.mxu0 0.0
  %62 = vmatpush1.xpose.msra.mxu0 0.0
  %63 = vmatprep.subr.mxu0 0.0
  %64 = vmatpush1.xpose.msra.mxu0 0.0
  %65 = vmatprep.subr.mxu0 0.0
  %66 = vmatpush1.xpose.msra.mxu0 0.0
  %67 = vmatprep.subr.mxu0 0.0
  %68 = vmatpush1.xpose.msra.mxu0 0.0
  %69 = vmatprep.subr.mxu0 0.0
  %70 = vmatpush1.xpose.msra.mxu0 0.0
  %71 = vmatprep.subr.mxu0 0.0
  %72 = vmatpush1.xpose.msra.mxu0 0.0
  %73 = vmatprep.subr.mxu0 0.0
  %74 = vmatpush1.xpose.msra.mxu0 0.0
  %75 = vmatprep.subr.mxu0 0.0
  %76 = vmatpush1.xpose.msra.mxu0 0.0
  %77 = vmatprep.subr.mxu0 0.0
  %78 = vmatpush1.xpose.msra.mxu0 0.0
  %79 = vmatprep.subr.mxu0 0.0
  %80 = vmatpush1.xpose.msra.mxu0 0.0
  %81 = vmatprep.subr.mxu0 0.0
  %82 = vmatpush1.xpose.msra.mxu0 0.0
  %83 = vmatprep.subr.mxu0 0.0
  %84 = vmatpush1.xpose.msra.mxu0 0.0
  %85 = vmatprep.subr.mxu0 0.0
  %86 = vmatpush1.xpose.msra.mxu0 0.0
  %87 = vmatprep.subr.mxu0 0.0
  %88 = vmatpush1.xpose.msra.mxu0 0.0
  %89 = vmatprep.subr.mxu0 0.0
  %90 = vmatpush1.xpose.msra.mxu0 0.0
  %91 = vmatprep.subr.mxu0 0.0
  %92 = vmatpush1.xpose.msra.mxu0 0.0
  %93 = vmatprep.subr.mxu0 0.0
  %94 = vmatpush1.xpose.msra.mxu0 0.0
  %95 = vmatprep.subr.mxu0 0.0
  %96 = vmatpush1.xpose.msra.mxu0 0.0
  %97 = vmatprep.mubr.f32.mxu0 0.0
  %98 = vmatmul.mubr.f32.gmra.mrb[0].mxu0 %v29
  %v99 = vpop.f32.mrb[0].mxu0
  %v100 = vadd.f32 0.0, %v99
  %v101 = vpop.f32.mrb[0].mxu0
  %102 = vdwg.mxu0
  %104 = vset.pattern.permute.xlu0 0
  %105 = vperm.xlu0 %104, %v31
  %v106 = vpop.permute.xlu0 %105
  %v109 = vlaneseq
  %v110 = vshrl.u32 %v109, 7
  %v111 = vsub.s32 0, %v110
  %v112 = vrot.slane %v32, %v111
  %v114 = vadd.f32 %v106, %v112
  %v115 = vmul.f32 %v100, 2.0
  %v116 = vsub.f32 %v114, %v115
  %v117 = vmax.f32 %v116, 0.0
  %s118 = smul.u32 0, 8
  %v119 = vlaneseq
  %v120 = vand.u32 %v119, 127
  %v121 = vstv %s118
  %v122 = vadd.s32 %v121, %v120
  %v123 = vld [vmem:[%s4] sm:$0xff]
  %v124 = vld [vmem:[%s5] sm:$0x1]
  %125 = vset.pattern.permute.xlu0 0
  %126 = vperm.xlu0 %125, %v123
  %v127 = vpop.permute.xlu0 %126
  %v128 = vlaneseq
  %v129 = vshrl.u32 %v128, 7
  %v130 = vsub.s32 0, %v129
  %v131 = vrot.slane %v124, %v130
  %vm132 = vcmp.ne.s32.totalorder %v127, %v131
  %vm133 = vcmp.gt.f32.partialorder %v117, 0.0
  %vm134 = vmand %vm132, %vm133
  %vm135 = vcmp.lt.s32.totalorder %v122, 8
  %v136 = vsel %vm135, 1, 0
  %vm137 = vcmp.eq.s32.totalorder %v136, 1
  %vm138 = vmand %vm134, %vm137
  %v139 = vrsqrt.pop %v117
  %v140 = vmul.f32 %v117, %v139
  %vm141 = vcmp.eq.f32.partialorder %v117, inf
  %v142 = vsel %vm141, %v117, %v140
  %vm143 = vcmp.eq.f32.partialorder %v117, 0.0
  %v144 = vand.u32 %v117, 2147483648
  %v145 = vsel %vm143, %v144, %v142
  %v146 = vld [vmem:[%s6] sm:$0xff]
  %v147 = vsub.f32 1.0, %v145
  %v148 = vmul.f32 %v147, 1.442695
  %v149 = vpow.pop %v148
  %v150 = vsel %vm138, %v149, 0.0
  %vm151 = vcmask 64512
  %v152 = vsel %vm151, %v150, 0.0
  %153 = vadd.xlane.f32.xlu0 %v152
  %v154 = vpop.xlane.xlu0 %153
  %v155 = vadd.f32 %v146, %v154
  %vm156 = vcmask 7168
  %157 = vst.msk [vmem:[%s6] sm:$0xff] %vm156, %v155
  // Predicated region
  $region30: #{tpu_custom_call.1} parent=0 // pred_check
    _
  $region31: #{tpu_custom_call.1} parent=0 // pred_check_branch
    %159 = sbr.rel (0) target = $region33
  $region32: #{tpu_custom_call.1} parent=0 // pred_region
    _
  $region33: #{tpu_custom_call.1} parent=0 // pred_fallthru
    _
  // Predicated region
  $region34: #{tpu_custom_call.1} parent=0 // pred_check
    _
  $region35: #{tpu_custom_call.1} parent=0 // pred_check_branch
    %161 = sbr.rel (0) target = $region37
  $region36: #{tpu_custom_call.1} parent=0 // pred_region
    _
  $region37: #{tpu_custom_call.1} parent=0 // pred_fallthru
    _

</llo_original>
